<compile_context>
chip_gen: v7x
topology: tpu7x:2x2x1
jax: 0.10.0
libtpu: 0.0.40
codegen_flags: <defaults>
</compile_context>

<pallas_src>
import functools

import jax
import jax.numpy as jnp
from jax.experimental import pallas as pl
from jax.experimental.pallas import tpu as pltpu


def actor_forward_kernel(x_ref, w1_ref, b1_ref, w2_ref, b2_ref, w3_ref, b3_ref,
                         o_ref, *, matmul_dtype):
    """Fused MLP: relu(relu(x@W1+b1)@W2+b2)@W3+b3 for one batch tile.

    Matmul operands are cast to `matmul_dtype` (f32 no-op, or bf16 for the
    v6e/v7x MXU rate); accumulation is always f32, bias add / ReLU are f32.
    """
    md = matmul_dtype

    h1 = jnp.dot(x_ref[...].astype(md), w1_ref[...].astype(md),
                 preferred_element_type=jnp.float32) + b1_ref[...]
    h1 = jnp.maximum(h1, 0.0)

    h2 = jnp.dot(h1.astype(md), w2_ref[...].astype(md),
                 preferred_element_type=jnp.float32) + b2_ref[...]
    h2 = jnp.maximum(h2, 0.0)

    mean = jnp.dot(h2.astype(md), w3_ref[...].astype(md),
                   preferred_element_type=jnp.float32) + b3_ref[...]
    o_ref[...] = mean.astype(o_ref.dtype)


@functools.partial(jax.jit, static_argnames=("block_b", "matmul_dtype"))
def actor_forward(state, w1, b1, w2, b2, w3, b3, *, block_b=None,
                  matmul_dtype=jnp.float32):
    B, state_dims = state.shape
    fc1_dims = w1.shape[1]
    fc2_dims = w2.shape[1]
    action_dims = w3.shape[1]

    # Lane-pad the mu layer: output columns up to a multiple of 128 so the final
    # matmul fills MXU columns and stores are lane-dense (unmasked vst).
    out_pad = max(128, pl.cdiv(action_dims, 128) * 128)
    if out_pad != action_dims:
        w3 = jnp.pad(w3, ((0, 0), (0, out_pad - action_dims)))
        b3 = jnp.pad(b3, ((0, 0), (0, out_pad - action_dims)))

    # Default: whole batch in one grid step (rounded up to sublane multiple of 8).
    if block_b is None:
        block_b = max(8, pl.cdiv(B, 8) * 8)
    assert block_b % 8 == 0, "batch tile must be a multiple of the sublane (8)"

    Bp = pl.cdiv(B, block_b) * block_b
    if Bp != B:
        state = jnp.pad(state, ((0, Bp - B), (0, 0)))

    grid = (Bp // block_b,)

    # Batch axis is tiled; weights/biases are fully resident (same block every step).
    # NOTE: at large hidden dims on v7x (64 MiB VMEM), add
    # pipeline_mode=pl.Buffered(1) to the weight specs / raise vmem_limit_bytes.
    in_specs = [
        pl.BlockSpec((block_b, state_dims), lambda i: (i, 0)),    # state tile
        pl.BlockSpec((state_dims, fc1_dims), lambda i: (0, 0)),   # W1
        pl.BlockSpec((1, fc1_dims), lambda i: (0, 0)),            # b1
        pl.BlockSpec((fc1_dims, fc2_dims), lambda i: (0, 0)),     # W2
        pl.BlockSpec((1, fc2_dims), lambda i: (0, 0)),            # b2
        pl.BlockSpec((fc2_dims, out_pad), lambda i: (0, 0)),      # W3 (mu, lane-padded)
        pl.BlockSpec((1, out_pad), lambda i: (0, 0)),             # b3 (lane-padded)
    ]
    out_specs = pl.BlockSpec((block_b, out_pad), lambda i: (i, 0))

    flops = 2 * Bp * (state_dims * fc1_dims + fc1_dims * fc2_dims + fc2_dims * out_pad)
    bytes_accessed = 4 * (
        Bp * state_dims
        + state_dims * fc1_dims + fc1_dims
        + fc1_dims * fc2_dims + fc2_dims
        + fc2_dims * out_pad + out_pad
        + Bp * out_pad
    )

    out = pl.pallas_call(
        functools.partial(actor_forward_kernel, matmul_dtype=matmul_dtype),
        out_shape=jax.ShapeDtypeStruct((Bp, out_pad), jnp.float32),
        grid=grid,
        in_specs=in_specs,
        out_specs=out_specs,
        compiler_params=pltpu.CompilerParams(
            dimension_semantics=("parallel",),   # megacore batch sharding on v7x
        ),
        cost_estimate=pl.CostEstimate(
            flops=flops, transcendentals=0, bytes_accessed=bytes_accessed),
    )(state, w1, b1, w2, b2, w3, b3)

    # Strip batch padding and lane padding (padded mu columns are exactly zero).
    return out[:B, :action_dims]


def init_actor_params(key, state_dims, fc1_dims, fc2_dims, action_dims):
    """Deterministic init mimicking PyTorch nn.Linear default (uniform ±1/sqrt(fan_in)).

    Weights are returned already transposed to [in, out] for the kernel layout.
    """
    ks = jax.random.split(key, 6)

    def linear(kw, kb, fan_in, fan_out):
        bound = 1.0 / jnp.sqrt(fan_in)
        w = jax.random.uniform(kw, (fan_in, fan_out), jnp.float32, -bound, bound)
        b = jax.random.uniform(kb, (1, fan_out), jnp.float32, -bound, bound)
        return w, b

    w1, b1 = linear(ks[0], ks[1], state_dims, fc1_dims)
    w2, b2 = linear(ks[2], ks[3], fc1_dims, fc2_dims)
    w3, b3 = linear(ks[4], ks[5], fc2_dims, action_dims)
    # NOTE: self.log_std / cov_mat / MultivariateNormal sampling live outside
    # forward(); forward() only returns the mean.
    # TODO(synk): MultivariateNormal rsample/log_prob (sample/get_log_prob) not kernelized.
    return w1, b1, w2, b2, w3, b3


def actor_forward_ref(state, w1, b1, w2, b2, w3, b3):
    """Plain-JAX reference for correctness checking."""
    h1 = jnp.maximum(state @ w1 + b1, 0.0)
    h2 = jnp.maximum(h1 @ w2 + b2, 0.0)
    return h2 @ w3 + b3


if __name__ == "__main__":
    # Small, module-consistent shapes: batch=16, state_dims=32, fc1=fc2=256, action_dims=8.
    B, state_dims, fc1_dims, fc2_dims, action_dims = 16, 32, 256, 256, 8

    key = jax.random.PRNGKey(0)
    k_params, k_state = jax.random.split(key)

    params = init_actor_params(k_params, state_dims, fc1_dims, fc2_dims, action_dims)
    state = jax.random.normal(k_state, (B, state_dims), dtype=jnp.float32)

    ref = actor_forward_ref(state, *params)

    # f32 matmul path (bit-accurate vs reference).
    mean = jax.block_until_ready(actor_forward(state, *params))
    assert mean.shape == (B, action_dims)
    assert jnp.allclose(mean, ref, atol=1e-5, rtol=1e-5), "f32 mismatch vs reference"

    # bf16 matmul-operand path (v6e/v7x MXU rate); f32 accumulation, looser tolerance.
    mean_bf16 = jax.block_until_ready(
        actor_forward(state, *params, matmul_dtype=jnp.bfloat16))
    assert mean_bf16.shape == (B, action_dims)
    assert jnp.allclose(mean_bf16, ref, atol=5e-2, rtol=5e-2), "bf16 mismatch vs reference"

    print("KERNEL_OK")
</pallas_src>

<mosaic_0001>
module attributes {stable_mosaic.version = 11 : i64} {
  func.func @actor_forward_kernel(%arg0: i32, %arg1: memref<16x32xf32, #tpu.memory_space<vmem>>, %arg2: memref<32x256xf32, #tpu.memory_space<vmem>>, %arg3: memref<1x256xf32, #tpu.memory_space<vmem>>, %arg4: memref<256x256xf32, #tpu.memory_space<vmem>>, %arg5: memref<1x256xf32, #tpu.memory_space<vmem>>, %arg6: memref<256x128xf32, #tpu.memory_space<vmem>>, %arg7: memref<1x128xf32, #tpu.memory_space<vmem>>, %arg8: memref<16x128xf32, #tpu.memory_space<vmem>>) attributes {dimension_semantics = [#tpu.dimension_semantics<parallel>], iteration_bounds = array<i64: 1>, scalar_prefetch = 0 : i64, scratch_operands = 0 : i64, tpu.core_type = #tpu.core_type<tc>, window_params = [{transform_indices = @transform_0, window_bounds = array<i64: 16, 32>}, {pipeline_mode = #tpu.pipeline_mode<synchronous>, transform_indices = @transform_1, window_bounds = array<i64: 32, 256>}, {pipeline_mode = #tpu.pipeline_mode<synchronous>, transform_indices = @transform_2, window_bounds = array<i64: 1, 256>}, {pipeline_mode = #tpu.pipeline_mode<synchronous>, transform_indices = @transform_3, window_bounds = array<i64: 256, 256>}, {pipeline_mode = #tpu.pipeline_mode<synchronous>, transform_indices = @transform_4, window_bounds = array<i64: 1, 256>}, {pipeline_mode = #tpu.pipeline_mode<synchronous>, transform_indices = @transform_5, window_bounds = array<i64: 256, 128>}, {pipeline_mode = #tpu.pipeline_mode<synchronous>, transform_indices = @transform_6, window_bounds = array<i64: 1, 128>}, {transform_indices = @transform_7, window_bounds = array<i64: 16, 128>}]} {
    %c0 = arith.constant 0 : index
    %c0_0 = arith.constant 0 : index
    %0 = vector.load %arg1[%c0, %c0_0] : memref<16x32xf32, #tpu.memory_space<vmem>>, vector<16x32xf32>
    %c0_1 = arith.constant 0 : index
    %c0_2 = arith.constant 0 : index
    %1 = vector.load %arg2[%c0_1, %c0_2] : memref<32x256xf32, #tpu.memory_space<vmem>>, vector<32x256xf32>
    %cst = arith.constant dense<0.000000e+00> : vector<16x256xf32>
    %2 = tpu.matmul %0, %1, %cst {dimension_numbers = #tpu.dot_dimension_numbers<[1], [0], [0], [1], [0, 0, 1, 1], [], []>} : vector<16x32xf32>, vector<32x256xf32>, vector<16x256xf32> -> vector<16x256xf32>
    %c0_3 = arith.constant 0 : index
    %c0_4 = arith.constant 0 : index
    %3 = vector.load %arg3[%c0_3, %c0_4] : memref<1x256xf32, #tpu.memory_space<vmem>>, vector<1x256xf32>
    %4 = vector.broadcast %3 : vector<1x256xf32> to vector<16x256xf32>
    %5 = arith.addf %2, %4 : vector<16x256xf32>
    %cst_5 = arith.constant 0.000000e+00 : f32
    %6 = vector.broadcast %cst_5 : f32 to vector<16x256xf32>
    %7 = arith.maximumf %5, %6 : vector<16x256xf32>
    %c0_6 = arith.constant 0 : index
    %c0_7 = arith.constant 0 : index
    %8 = vector.load %arg4[%c0_6, %c0_7] : memref<256x256xf32, #tpu.memory_space<vmem>>, vector<256x256xf32>
    %cst_8 = arith.constant dense<0.000000e+00> : vector<16x256xf32>
    %9 = tpu.matmul %7, %8, %cst_8 {dimension_numbers = #tpu.dot_dimension_numbers<[1], [0], [0], [1], [0, 0, 1, 1], [], []>} : vector<16x256xf32>, vector<256x256xf32>, vector<16x256xf32> -> vector<16x256xf32>
    %c0_9 = arith.constant 0 : index
    %c0_10 = arith.constant 0 : index
    %10 = vector.load %arg5[%c0_9, %c0_10] : memref<1x256xf32, #tpu.memory_space<vmem>>, vector<1x256xf32>
    %11 = vector.broadcast %10 : vector<1x256xf32> to vector<16x256xf32>
    %12 = arith.addf %9, %11 : vector<16x256xf32>
    %cst_11 = arith.constant 0.000000e+00 : f32
    %13 = vector.broadcast %cst_11 : f32 to vector<16x256xf32>
    %14 = arith.maximumf %12, %13 : vector<16x256xf32>
    %c0_12 = arith.constant 0 : index
    %c0_13 = arith.constant 0 : index
    %15 = vector.load %arg6[%c0_12, %c0_13] : memref<256x128xf32, #tpu.memory_space<vmem>>, vector<256x128xf32>
    %cst_14 = arith.constant dense<0.000000e+00> : vector<16x128xf32>
    %16 = tpu.matmul %14, %15, %cst_14 {dimension_numbers = #tpu.dot_dimension_numbers<[1], [0], [0], [1], [0, 0, 1, 1], [], []>} : vector<16x256xf32>, vector<256x128xf32>, vector<16x128xf32> -> vector<16x128xf32>
    %c0_15 = arith.constant 0 : index
    %c0_16 = arith.constant 0 : index
    %17 = vector.load %arg7[%c0_15, %c0_16] : memref<1x128xf32, #tpu.memory_space<vmem>>, vector<1x128xf32>
    %18 = vector.broadcast %17 : vector<1x128xf32> to vector<16x128xf32>
    %19 = arith.addf %16, %18 : vector<16x128xf32>
    %c0_17 = arith.constant 0 : index
    %c0_18 = arith.constant 0 : index
    %20 = vector.load %arg8[%c0_17, %c0_18] : memref<16x128xf32, #tpu.memory_space<vmem>>, vector<16x128xf32>
    tpu.vector_store %arg8[%c0_17, %c0_18], %19 {strides = array<i32>} : memref<16x128xf32, #tpu.memory_space<vmem>>, vector<16x128xf32>,
    return
  }
  func.func @transform_0(%arg0: i32) -> (i32, i32) {
    %c0_i32 = arith.constant 0 : i32
    %c0_i32_0 = arith.constant 0 : i32
    return %arg0, %c0_i32 : i32, i32
  }
  func.func @transform_1(%arg0: i32) -> (i32, i32) {
    %c0_i32 = arith.constant 0 : i32
    %c0_i32_0 = arith.constant 0 : i32
    %c0_i32_1 = arith.constant 0 : i32
    return %c0_i32, %c0_i32_0 : i32, i32
  }
  func.func @transform_2(%arg0: i32) -> (i32, i32) {
    %c0_i32 = arith.constant 0 : i32
    %c0_i32_0 = arith.constant 0 : i32
    %c0_i32_1 = arith.constant 0 : i32
    return %c0_i32, %c0_i32_0 : i32, i32
  }
  func.func @transform_3(%arg0: i32) -> (i32, i32) {
    %c0_i32 = arith.constant 0 : i32
    %c0_i32_0 = arith.constant 0 : i32
    %c0_i32_1 = arith.constant 0 : i32
    return %c0_i32, %c0_i32_0 : i32, i32
  }
  func.func @transform_4(%arg0: i32) -> (i32, i32) {
    %c0_i32 = arith.constant 0 : i32
    %c0_i32_0 = arith.constant 0 : i32
    %c0_i32_1 = arith.constant 0 : i32
    return %c0_i32, %c0_i32_0 : i32, i32
  }
  func.func @transform_5(%arg0: i32) -> (i32, i32) {
    %c0_i32 = arith.constant 0 : i32
    %c0_i32_0 = arith.constant 0 : i32
    %c0_i32_1 = arith.constant 0 : i32
    return %c0_i32, %c0_i32_0 : i32, i32
  }
  func.func @transform_6(%arg0: i32) -> (i32, i32) {
    %c0_i32 = arith.constant 0 : i32
    %c0_i32_0 = arith.constant 0 : i32
    %c0_i32_1 = arith.constant 0 : i32
    return %c0_i32, %c0_i32_0 : i32, i32
  }
  func.func @transform_7(%arg0: i32) -> (i32, i32) {
    %c0_i32 = arith.constant 0 : i32
    %c0_i32_0 = arith.constant 0 : i32
    return %arg0, %c0_i32 : i32, i32
  }
}

</mosaic_0001>

<llo_original>
// kernel: actor_forward.1
$region0: #{actor_forward.1}
  #allocation0 [shape = 'u32[]', space=smem, size = 0x4, offset = 0x4, fixed_abs, tag = 'smem constant byte address 0x4 - core index']
  #allocation1 [shape = 'u32[144,128]{1,0:T(1,128)}', space=vmem, size = 0x12000, scoped, tag = 'internal scratch']
  %s0 = inlined_call_operand.vmem [shape: f32[16,32], index: 0, kind: input, shape index: {}]
  %s1 = inlined_call_operand.vmem [shape: f32[32,256], index: 1, kind: input, shape index: {}]
  %s2 = inlined_call_operand.vmem [shape: f32[1,256], index: 2, kind: input, shape index: {}]
  %s3 = inlined_call_operand.vmem [shape: f32[256,256], index: 3, kind: input, shape index: {}]
  %s4 = inlined_call_operand.vmem [shape: f32[1,256], index: 4, kind: input, shape index: {}]
  %s5 = inlined_call_operand.vmem [shape: f32[256,128], index: 5, kind: input, shape index: {}]
  %s6 = inlined_call_operand.vmem [shape: f32[1,128], index: 6, kind: input, shape index: {}]
  %s7 = inlined_call_operand.vmem [shape: f32[16,128], index: 7, kind: output, shape index: {}]
  %s8 = sld [smem:[#allocation0]]
  $region38: #{actor_forward.1} parent=0
    _
  %s10 = ssub.s32 1, %s8
  %s11 = scalar_select 0, %s10, %s8
  // Predicated region
  $region2: #{actor_forward.1} parent=0 // pred_check
    _
  $region3: #{actor_forward.1} parent=0 // pred_check_branch
    %13 = sbr.rel (0) target = $region5
  $region4: #{actor_forward.1} parent=0 // pred_region
    _
  $region5: #{actor_forward.1} parent=0 // pred_fallthru
    _
  // Predicated region
  $region6: #{actor_forward.1} parent=0 // pred_check
    _
  $region7: #{actor_forward.1} parent=0 // pred_check_branch
    %15 = sbr.rel (0) target = $region9
  $region8: #{actor_forward.1} parent=0 // pred_region
    _
  $region9: #{actor_forward.1} parent=0 // pred_fallthru
    _
  // Predicated region
  $region10: #{actor_forward.1} parent=0 // pred_check
    _
  $region11: #{actor_forward.1} parent=0 // pred_check_branch
    %17 = sbr.rel (0) target = $region13
  $region12: #{actor_forward.1} parent=0 // pred_region
    _
  $region13: #{actor_forward.1} parent=0 // pred_fallthru
    _
  // Predicated region
  $region14: #{actor_forward.1} parent=0 // pred_check
    _
  $region15: #{actor_forward.1} parent=0 // pred_check_branch
    %19 = sbr.rel (0) target = $region17
  $region16: #{actor_forward.1} parent=0 // pred_region
    _
  $region17: #{actor_forward.1} parent=0 // pred_fallthru
    _
  // Predicated region
  $region18: #{actor_forward.1} parent=0 // pred_check
    _
  $region19: #{actor_forward.1} parent=0 // pred_check_branch
    %21 = sbr.rel (0) target = $region21
  $region20: #{actor_forward.1} parent=0 // pred_region
    _
  $region21: #{actor_forward.1} parent=0 // pred_fallthru
    _
  // Predicated region
  $region22: #{actor_forward.1} parent=0 // pred_check
    _
  $region23: #{actor_forward.1} parent=0 // pred_check_branch
    %23 = sbr.rel (0) target = $region25
  $region24: #{actor_forward.1} parent=0 // pred_region
    _
  $region25: #{actor_forward.1} parent=0 // pred_fallthru
    _
  // Predicated region
  $region26: #{actor_forward.1} parent=0 // pred_check
    _
  $region27: #{actor_forward.1} parent=0 // pred_check_branch
    %25 = sbr.rel (0) target = $region29
  $region28: #{actor_forward.1} parent=0 // pred_region
    _
  $region29: #{actor_forward.1} parent=0 // pred_fallthru
    _
  %v26 = vld [vmem:[%s0] sm:$0xff]
  %v27 = vld [vmem:[%s0 + $0x8] sm:$0xff]
  %v28 = vld [vmem:[%s1] sm:$0xff]
  %v29 = vld [vmem:[%s1 + $0x8] sm:$0xff]
  %v30 = vld [vmem:[%s1 + $0x10] sm:$0xff]
  %v31 = vld [vmem:[%s1 + $0x18] sm:$0xff]
  %v32 = vld [vmem:[%s1 + $0x20] sm:$0xff]
  %v33 = vld [vmem:[%s1 + $0x28] sm:$0xff]
  %v34 = vld [vmem:[%s1 + $0x30] sm:$0xff]
  %v35 = vld [vmem:[%s1 + $0x38] sm:$0xff]
  %v36 = vld [vmem:[%s2] sm:$0x3]
  %v38 = vlaneseq
  %v39 = vshrl.u32 %v38, 7
  %v40 = vsub.s32 0, %v39
  %v41 = vrot.slane %v36, %v40
  %v42 = vlaneseq
  %v43 = vshrl.u32 %v42, 7
  %v44 = vsub.s32 1, %v43
  %v45 = vrot.slane %v36, %v44
  %vm48 = vcmask 261120
  %v50 = vsel %vm48, %v26, 0
  %v53 = vsel %vm48, %v27, 0
  %55 = vmatprep.subr.mxu0 %v29
  %56 = vmatpush1.msra.mxu0 %v28
  %57 = vmatprep.subr.mxu0 %v31
  %58 = vmatpush1.msra.mxu0 %v30
  %59 = vmatprep.subr.mxu0 %v33
  %60 = vmatpush1.msra.mxu0 %v32
  %61 = vmatprep.subr.mxu0 %v35
  %62 = vmatpush1.msra.mxu0 %v34
  %63 = vmatprep.subr.mxu0 0.0
  %64 = vmatpush1.msra.mxu0 0.0
  %65 = vmatprep.subr.mxu0 0.0
  %66 = vmatpush1.msra.mxu0 0.0
  %67 = vmatprep.subr.mxu0 0.0
  %68 = vmatpush1.msra.mxu0 0.0
  %69 = vmatprep.subr.mxu0 0.0
  %70 = vmatpush1.msra.mxu0 0.0
  %71 = vmatprep.subr.mxu0 0.0
  %72 = vmatpush1.msra.mxu0 0.0
  %73 = vmatprep.subr.mxu0 0.0
  %74 = vmatpush1.msra.mxu0 0.0
  %75 = vmatprep.subr.mxu0 0.0
  %76 = vmatpush1.msra.mxu0 0.0
  %77 = vmatprep.subr.mxu0 0.0
  %78 = vmatpush1.msra.mxu0 0.0
  %79 = vmatprep.subr.mxu0 0.0
  %80 = vmatpush1.msra.mxu0 0.0
  %81 = vmatprep.subr.mxu0 0.0
  %82 = vmatpush1.msra.mxu0 0.0
  %83 = vmatprep.subr.mxu0 0.0
  %84 = vmatpush1.msra.mxu0 0.0
  %85 = vmatprep.subr.mxu0 0.0
  %86 = vmatpush1.msra.mxu0 0.0
  %87 = vmatprep.subr.mxu0 0.0
  %88 = vmatpush1.msra.mxu0 0.0
  %89 = vmatprep.subr.mxu0 0.0
  %90 = vmatpush1.msra.mxu0 0.0
  %91 = vmatprep.subr.mxu0 0.0
  %92 = vmatpush1.msra.mxu0 0.0
  %93 = vmatprep.subr.mxu0 0.0
  %94 = vmatpush1.msra.mxu0 0.0
  %95 = vmatprep.subr.mxu0 0.0
  %96 = vmatpush1.msra.mxu0 0.0
  %97 = vmatprep.subr.mxu0 0.0
  %98 = vmatpush1.msra.mxu0 0.0
  %99 = vmatprep.subr.mxu0 0.0
  %100 = vmatpush1.msra.mxu0 0.0
  %101 = vmatprep.subr.mxu0 0.0
  %102 = vmatpush1.msra.mxu0 0.0
  %103 = vmatprep.subr.mxu0 0.0
  %104 = vmatpush1.msra.mxu0 0.0
  %105 = vmatprep.subr.mxu0 0.0
  %106 = vmatpush1.msra.mxu0 0.0
  %107 = vmatprep.subr.mxu0 0.0
  %108 = vmatpush1.msra.mxu0 0.0
  %109 = vmatprep.subr.mxu0 0.0
  %110 = vmatpush1.msra.mxu0 0.0
  %111 = vmatprep.subr.mxu0 0.0
  %112 = vmatpush1.msra.mxu0 0.0
  %113 = vmatprep.subr.mxu0 0.0
  %114 = vmatpush1.msra.mxu0 0.0
  %115 = vmatprep.subr.mxu0 0.0
  %116 = vmatpush1.msra.mxu0 0.0
  %117 = vmatprep.subr.mxu0 0.0
  %118 = vmatpush1.msra.mxu0 0.0
  %119 = vmatprep.mubr.f32.mxu0 0.0
  %120 = vmatmul.mubr.f32.gmra.mrb[0].mxu0 %v50
  %v121 = vpop.f32.mrb[0].mxu0
  %v122 = vadd.f32 %v41, %v121
  %v123 = vpop.f32.mrb[0].mxu0
  %v124 = vadd.f32 %v45, %v123
  %125 = vmatprep.mubr.f32.mxu0 0.0
  %126 = vmatmul.mubr.f32.gmra.mrb[0].mxu0 %v53
  %v127 = vpop.f32.mrb[0].mxu0
  %v128 = vadd.f32 %v41, %v127
  %v129 = vpop.f32.mrb[0].mxu0
  %v130 = vadd.f32 %v45, %v129
  %131 = vdwg.mxu0
  %v132 = vmax.f32 %v122, 0.0
  %v133 = vmax.f32 %v124, 0.0
  %v134 = vmax.f32 %v128, 0.0
  %v135 = vmax.f32 %v130, 0.0
  %v136 = vld [vmem:[%s3] sm:$0xff]
  %v137 = vld [vmem:[%s3 + $0x8] sm:$0xff]
  %v138 = vld [vmem:[%s3 + $0x10] sm:$0xff]
  %v139 = vld [vmem:[%s3 + $0x18] sm:$0xff]
  %v140 = vld [vmem:[%s3 + $0x20] sm:$0xff]
  %v141 = vld [vmem:[%s3 + $0x28] sm:$0xff]
  %v142 = vld [vmem:[%s3 + $0x30] sm:$0xff]
  %v143 = vld [vmem:[%s3 + $0x38] sm:$0xff]
  %v144 = vld [vmem:[%s3 + $0x40] sm:$0xff]
  %v145 = vld [vmem:[%s3 + $0x48] sm:$0xff]
  %v146 = vld [vmem:[%s3 + $0x50] sm:$0xff]
  %v147 = vld [vmem:[%s3 + $0x58] sm:$0xff]
  %v148 = vld [vmem:[%s3 + $0x60] sm:$0xff]
  %v149 = vld [vmem:[%s3 + $0x68] sm:$0xff]
  %v150 = vld [vmem:[%s3 + $0x70] sm:$0xff]
  %v151 = vld [vmem:[%s3 + $0x78] sm:$0xff]
  %v152 = vld [vmem:[%s3 + $0x80] sm:$0xff]
  %v153 = vld [vmem:[%s3 + $0x88] sm:$0xff]
  %v154 = vld [vmem:[%s3 + $0x90] sm:$0xff]
  %v155 = vld [vmem:[%s3 + $0x98] sm:$0xff]
  %v156 = vld [vmem:[%s3 + $0xa0] sm:$0xff]
  %v157 = vld [vmem:[%s3 + $0xa8] sm:$0xff]
  %v158 = vld [vmem:[%s3 + $0xb0] sm:$0xff]
  %v159 = vld [vmem:[%s3 + $0xb8] sm:$0xff]
  %v160 = vld [vmem:[%s3 + $0xc0] sm:$0xff]
  %v161 = vld [vmem:[%s3 + $0xc8] sm:$0xff]
  %v162 = vld [vmem:[%s3 + $0xd0] sm:$0xff]
  %v163 = vld [vmem:[%s3 + $0xd8] sm:$0xff]
  %v164 = vld [vmem:[%s3 + $0xe0] sm:$0xff]
  %v165 = vld [vmem:[%s3 + $0xe8] sm:$0xff]
  %v166 = vld [vmem:[%s3 + $0xf0] sm:$0xff]
  %v167 = vld [vmem:[%s3 + $0xf8] sm:$0xff]
  %v168 = vld [vmem:[%s3 + $0x100] sm:$0xff]
  %v169 = vld [vmem:[%s3 + $0x108] sm:$0xff]
  %v170 = vld [vmem:[%s3 + $0x110] sm:$0xff]
  %v171 = vld [vmem:[%s3 + $0x118] sm:$0xff]
  %v172 = vld [vmem:[%s3 + $0x120] sm:$0xff]
  %v173 = vld [vmem:[%s3 + $0x128] sm:$0xff]
  %v174 = vld [vmem:[%s3 + $0x130] sm:$0xff]
  %v175 = vld [vmem:[%s3 + $0x138] sm:$0xff]
  %v176 = vld [vmem:[%s3 + $0x140] sm:$0xff]
  %v177 = vld [vmem:[%s3 + $0x148] sm:$0xff]
  %v178 = vld [vmem:[%s3 + $0x150] sm:$0xff]
  %v179 = vld [vmem:[%s3 + $0x158] sm:$0xff]
  %v180 = vld [vmem:[%s3 + $0x160] sm:$0xff]
  %v181 = vld [vmem:[%s3 + $0x168] sm:$0xff]
  %v182 = vld [vmem:[%s3 + $0x170] sm:$0xff]
  %v183 = vld [vmem:[%s3 + $0x178] sm:$0xff]
  %v184 = vld [vmem:[%s3 + $0x180] sm:$0xff]
  %v185 = vld [vmem:[%s3 + $0x188] sm:$0xff]
  %v186 = vld [vmem:[%s3 + $0x190] sm:$0xff]
  %v187 = vld [vmem:[%s3 + $0x198] sm:$0xff]
  %v188 = vld [vmem:[%s3 + $0x1a0] sm:$0xff]
  %v189 = vld [vmem:[%s3 + $0x1a8] sm:$0xff]
  %v190 = vld [vmem:[%s3 + $0x1b0] sm:$0xff]
  %v191 = vld [vmem:[%s3 + $0x1b8] sm:$0xff]
  %v192 = vld [vmem:[%s3 + $0x1c0] sm:$0xff]
  %v193 = vld [vmem:[%s3 + $0x1c8] sm:$0xff]
  %v194 = vld [vmem:[%s3 + $0x1d0] sm:$0xff]
  %v195 = vld [vmem:[%s3 + $0x1d8] sm:$0xff]
  %v196 = vld [vmem:[%s3 + $0x1e0] sm:$0xff]
  %v197 = vld [vmem:[%s3 + $0x1e8] sm:$0xff]
  %v198 = vld [vmem:[%s3 + $0x1f0] sm:$0xff]
  %v199 = vld [vmem:[%s3 + $0x1f8] sm:$0xff]
  %v200 = vld [vmem:[%s4] sm:$0x3]
  %v202 = vlaneseq
  %v203 = vshrl.u32 %v202, 7
  %v204 = vsub.s32 0, %v203
  %v205 = vrot.slane %v200, %v204
  %v206 = vlaneseq
  %v207 = vshrl.u32 %v206, 7
  %v208 = vsub.s32 1, %v207
  %v209 = vrot.slane %v200, %v208
  %212 = vmatprep.subr.mxu0 %v137
  %213 = vmatpush1.msra.mxu0 %v136
  %214 = vmatprep.subr.mxu0 %v139
  %215 = vmatpush1.msra.mxu0 %v138
  %216 = vmatprep.subr.mxu0 %v141
  %217 = vmatpush1.msra.mxu0 %v140
  %218 = vmatprep.subr.mxu0 %v143
  %219 = vmatpush1.msra.mxu0 %v142
  %220 = vmatprep.subr.mxu0 %v145
  %221 = vmatpush1.msra.mxu0 %v144
  %222 = vmatprep.subr.mxu0 %v147
  %223 = vmatpush1.msra.mxu0 %v146
  %224 = vmatprep.subr.mxu0 %v149
  %225 = vmatpush1.msra.mxu0 %v148
  %226 = vmatprep.subr.mxu0 %v151
  %227 = vmatpush1.msra.mxu0 %v150
  %228 = vmatprep.subr.mxu0 %v153
  %229 = vmatpush1.msra.mxu0 %v152
  %230 = vmatprep.subr.mxu0 %v155
  %231 = vmatpush1.msra.mxu0 %v154
  %232 = vmatprep.subr.mxu0 %v157
  %233 = vmatpush1.msra.mxu0 %v156
  %234 = vmatprep.subr.mxu0 %v159
  %235 = vmatpush1.msra.mxu0 %v158
  %236 = vmatprep.subr.mxu0 %v161
  %237 = vmatpush1.msra.mxu0 %v160
  %238 = vmatprep.subr.mxu0 %v163
  %239 = vmatpush1.msra.mxu0 %v162
  %240 = vmatprep.subr.mxu0 %v165
  %241 = vmatpush1.msra.mxu0 %v164
  %242 = vmatprep.subr.mxu0 %v167
  %243 = vmatpush1.msra.mxu0 %v166
  %244 = vmatprep.subr.mxu0 %v169
  %245 = vmatpush1.msra.mxu0 %v168
  %246 = vmatprep.subr.mxu0 %v171
  %247 = vmatpush1.msra.mxu0 %v170
  %248 = vmatprep.subr.mxu0 %v173
  %249 = vmatpush1.msra.mxu0 %v172
  %250 = vmatprep.subr.mxu0 %v175
  %251 = vmatpush1.msra.mxu0 %v174
  %252 = vmatprep.subr.mxu0 %v177
  %253 = vmatpush1.msra.mxu0 %v176
  %254 = vmatprep.subr.mxu0 %v179
  %255 = vmatpush1.msra.mxu0 %v178
  %256 = vmatprep.subr.mxu0 %v181
  %257 = vmatpush1.msra.mxu0 %v180
  %258 = vmatprep.subr.mxu0 %v183
  %259 = vmatpush1.msra.mxu0 %v182
  %260 = vmatprep.subr.mxu0 %v185
  %261 = vmatpush1.msra.mxu0 %v184
  %262 = vmatprep.subr.mxu0 %v187
  %263 = vmatpush1.msra.mxu0 %v186
  %264 = vmatprep.subr.mxu0 %v189
  %265 = vmatpush1.msra.mxu0 %v188
  %266 = vmatprep.subr.mxu0 %v191
  %267 = vmatpush1.msra.mxu0 %v190
  %268 = vmatprep.subr.mxu0 %v193
  %269 = vmatpush1.msra.mxu0 %v192
  %270 = vmatprep.subr.mxu0 %v195
  %271 = vmatpush1.msra.mxu0 %v194
  %272 = vmatprep.subr.mxu0 %v197
  %273 = vmatpush1.msra.mxu0 %v196
  %274 = vmatprep.subr.mxu0 %v199
  %275 = vmatpush1.msra.mxu0 %v198
  %276 = vmatprep.mubr.f32.mxu0 %v133
  %277 = vmatmul.mubr.f32.gmra.mrb[0].mxu0 %v132
  %v278 = vpop.f32.mrb[0].mxu0
  %v279 = vadd.f32 %v205, %v278
  %v280 = vpop.f32.mrb[0].mxu0
  %v281 = vadd.f32 %v209, %v280
  %282 = vmatprep.mubr.f32.mxu0 %v135
  %283 = vmatmul.mubr.f32.gmra.mrb[0].mxu0 %v134
  %v284 = vpop.f32.mrb[0].mxu0
  %v285 = vadd.f32 %v205, %v284
  %v286 = vpop.f32.mrb[0].mxu0
  %v287 = vadd.f32 %v209, %v286
  %288 = vdwg.mxu0
  %v289 = vmax.f32 %v279, 0.0
  %v290 = vmax.f32 %v281, 0.0
  %v291 = vmax.f32 %v285, 0.0
  %v292 = vmax.f32 %v287, 0.0
  %v293 = vld [vmem:[%s5] sm:$0xff]
  %v294 = vld [vmem:[%s5 + $0x8] sm:$0xff]
  %v295 = vld [vmem:[%s5 + $0x10] sm:$0xff]
  %v296 = vld [vmem:[%s5 + $0x18] sm:$0xff]
  %v297 = vld [vmem:[%s5 + $0x20] sm:$0xff]
  %v298 = vld [vmem:[%s5 + $0x28] sm:$0xff]
  %v299 = vld [vmem:[%s5 + $0x30] sm:$0xff]
  %v300 = vld [vmem:[%s5 + $0x38] sm:$0xff]
  %v301 = vld [vmem:[%s5 + $0x40] sm:$0xff]
  %v302 = vld [vmem:[%s5 + $0x48] sm:$0xff]
  %v303 = vld [vmem:[%s5 + $0x50] sm:$0xff]
  %v304 = vld [vmem:[%s5 + $0x58] sm:$0xff]
  %v305 = vld [vmem:[%s5 + $0x60] sm:$0xff]
  %v306 = vld [vmem:[%s5 + $0x68] sm:$0xff]
  %v307 = vld [vmem:[%s5 + $0x70] sm:$0xff]
  %v308 = vld [vmem:[%s5 + $0x78] sm:$0xff]
  %v309 = vld [vmem:[%s5 + $0x80] sm:$0xff]
  %v310 = vld [vmem:[%s5 + $0x88] sm:$0xff]
  %v311 = vld [vmem:[%s5 + $0x90] sm:$0xff]
  %v312 = vld [vmem:[%s5 + $0x98] sm:$0xff]
  %v313 = vld [vmem:[%s5 + $0xa0] sm:$0xff]
  %v314 = vld [vmem:[%s5 + $0xa8] sm:$0xff]
  %v315 = vld [vmem:[%s5 + $0xb0] sm:$0xff]
  %v316 = vld [vmem:[%s5 + $0xb8] sm:$0xff]
  %v317 = vld [vmem:[%s5 + $0xc0] sm:$0xff]
  %v318 = vld [vmem:[%s5 + $0xc8] sm:$0xff]
  %v319 = vld [vmem:[%s5 + $0xd0] sm:$0xff]
  %v320 = vld [vmem:[%s5 + $0xd8] sm:$0xff]
  %v321 = vld [vmem:[%s5 + $0xe0] sm:$0xff]
  %v322 = vld [vmem:[%s5 + $0xe8] sm:$0xff]
  %v323 = vld [vmem:[%s5 + $0xf0] sm:$0xff]
  %v324 = vld [vmem:[%s5 + $0xf8] sm:$0xff]
  %v325 = vld [vmem:[%s6] sm:$0x1]
  %v327 = vlaneseq
  %v328 = vshrl.u32 %v327, 7
  %v329 = vsub.s32 0, %v328
  %v330 = vrot.slane %v325, %v329
  %332 = vmatprep.subr.mxu0 0.0
  %333 = vmatpush1.msra.mxu0 %v293
  %334 = vmatprep.subr.mxu0 0.0
  %335 = vmatpush1.msra.mxu0 %v294
  %336 = vmatprep.subr.mxu0 0.0
  %337 = vmatpush1.msra.mxu0 %v295
  %338 = vmatprep.subr.mxu0 0.0
  %339 = vmatpush1.msra.mxu0 %v296
  %340 = vmatprep.subr.mxu0 0.0
  %341 = vmatpush1.msra.mxu0 %v297
  %342 = vmatprep.subr.mxu0 0.0
  %343 = vmatpush1.msra.mxu0 %v298
  %344 = vmatprep.subr.mxu0 0.0
  %345 = vmatpush1.msra.mxu0 %v299
  %346 = vmatprep.subr.mxu0 0.0
  %347 = vmatpush1.msra.mxu0 %v300
  %348 = vmatprep.subr.mxu0 0.0
  %349 = vmatpush1.msra.mxu0 %v301
  %350 = vmatprep.subr.mxu0 0.0
  %351 = vmatpush1.msra.mxu0 %v302
  %352 = vmatprep.subr.mxu0 0.0
  %353 = vmatpush1.msra.mxu0 %v303
  %354 = vmatprep.subr.mxu0 0.0
  %355 = vmatpush1.msra.mxu0 %v304
  %356 = vmatprep.subr.mxu0 0.0
  %357 = vmatpush1.msra.mxu0 %v305
  %358 = vmatprep.subr.mxu0 0.0
  %359 = vmatpush1.msra.mxu0 %v306
  %360 = vmatprep.subr.mxu0 0.0
  %361 = vmatpush1.msra.mxu0 %v307
  %362 = vmatprep.subr.mxu0 0.0
  %363 = vmatpush1.msra.mxu0 %v308
  %364 = vmatprep.subr.mxu0 0.0
  %365 = vmatpush1.msra.mxu0 %v309
  %366 = vmatprep.subr.mxu0 0.0
  %367 = vmatpush1.msra.mxu0 %v310
  %368 = vmatprep.subr.mxu0 0.0
  %369 = vmatpush1.msra.mxu0 %v311
  %370 = vmatprep.subr.mxu0 0.0
  %371 = vmatpush1.msra.mxu0 %v312
  %372 = vmatprep.subr.mxu0 0.0
  %373 = vmatpush1.msra.mxu0 %v313
  %374 = vmatprep.subr.mxu0 0.0
  %375 = vmatpush1.msra.mxu0 %v314
  %376 = vmatprep.subr.mxu0 0.0
  %377 = vmatpush1.msra.mxu0 %v315
  %378 = vmatprep.subr.mxu0 0.0
  %379 = vmatpush1.msra.mxu0 %v316
  %380 = vmatprep.subr.mxu0 0.0
  %381 = vmatpush1.msra.mxu0 %v317
  %382 = vmatprep.subr.mxu0 0.0
  %383 = vmatpush1.msra.mxu0 %v318
  %384 = vmatprep.subr.mxu0 0.0
  %385 = vmatpush1.msra.mxu0 %v319
  %386 = vmatprep.subr.mxu0 0.0
  %387 = vmatpush1.msra.mxu0 %v320
  %388 = vmatprep.subr.mxu0 0.0
  %389 = vmatpush1.msra.mxu0 %v321
  %390 = vmatprep.subr.mxu0 0.0
  %391 = vmatpush1.msra.mxu0 %v322
  %392 = vmatprep.subr.mxu0 0.0
  %393 = vmatpush1.msra.mxu0 %v323
  %394 = vmatprep.subr.mxu0 0.0
  %395 = vmatpush1.msra.mxu0 %v324
  %396 = vmatprep.mubr.f32.mxu0 %v290
  %397 = vmatmul.mubr.f32.gmra.mrb[0].mxu0 %v289
  %v398 = vpop.f32.mrb[0].mxu0
  %v399 = vadd.f32 %v330, %v398
  %v400 = vpop.f32.mrb[0].mxu0
  %401 = vmatprep.mubr.f32.mxu0 %v292
  %402 = vmatmul.mubr.f32.gmra.mrb[0].mxu0 %v291
  %v403 = vpop.f32.mrb[0].mxu0
  %v404 = vadd.f32 %v330, %v403
  %v405 = vpop.f32.mrb[0].mxu0
  %406 = vdwg.mxu0
  %407 = vst [vmem:[%s7] sm:$0xff] %v399
  %408 = vst [vmem:[%s7 + $0x8] sm:$0xff] %v404
  // Predicated region
  $region30: #{actor_forward.1} parent=0 // pred_check
    _
  $region31: #{actor_forward.1} parent=0 // pred_check_branch
    %410 = sbr.rel (0) target = $region33
  $region32: #{actor_forward.1} parent=0 // pred_region
    _
  $region33: #{actor_forward.1} parent=0 // pred_fallthru
    _
  // Predicated region
  $region34: #{actor_forward.1} parent=0 // pred_check
    _
  $region35: #{actor_forward.1} parent=0 // pred_check_branch
    %412 = sbr.rel (0) target = $region37
  $region36: #{actor_forward.1} parent=0 // pred_region
    _
  $region37: #{actor_forward.1} parent=0 // pred_fallthru
    _

</llo_original>
